<compile_context>
chip_gen: v6e
topology: v6e:2x2x1
jax: 0.10.0
libtpu: 0.0.40
codegen_flags: <defaults>
</compile_context>

<pallas_src>
import functools
import math

import jax
import jax.numpy as jnp
from jax.experimental import pallas as pl
from jax.experimental.pallas import tpu as pltpu


def _round_up(n, m):
    return ((n + m - 1) // m) * m


# -----------------------------------------------------------------------------
# Kernel: one (tm, 1) tile of time steps -> one (tm, dim) tile of embeddings.
# -----------------------------------------------------------------------------
def _gff_kernel(t_ref, w_ref, o_ref, *, half, dim):
    t = t_ref[...].astype(jnp.float32)          # (tm, 1)
    w2pi = w_ref[...].astype(jnp.float32)       # (1, half), already scaled by 2*pi
    proj = t * w2pi                             # (tm, half) broadcast multiply (VPU)
    # Write directly into output slices -- no concatenate temp in VMEM.
    o_ref[:, :half] = jnp.sin(proj).astype(o_ref.dtype)
    o_ref[:, half:2 * half] = jnp.cos(proj).astype(o_ref.dtype)
    if dim % 2:                                 # odd dim -> one trailing zero column
        o_ref[:, 2 * half:] = jnp.zeros((t.shape[0], dim - 2 * half), o_ref.dtype)


# -----------------------------------------------------------------------------
# Wrapper
# -----------------------------------------------------------------------------
def gaussian_fourier_features(t, w, dim, *, max_rows=2048, out_dtype=jnp.float32):
    """t: arbitrary-shaped float array of time steps. w: (dim // 2,) fixed weights.

    Returns embeddings of shape t.shape + (dim,), with size-1 dims squeezed
    (mirrors the PyTorch module's `.squeeze()`; note this drops *all* size-1
    axes, exactly like torch).
    """
    half = dim // 2
    assert half >= 1, "dim must be >= 2"
    assert w.shape == (half,), (w.shape, half)

    batch_shape = t.shape
    n = int(math.prod(batch_shape)) if batch_shape else 1
    if n == 0:                                   # empty batch early-out
        return jnp.squeeze(jnp.zeros((*batch_shape, dim), out_dtype))

    t_flat = jnp.reshape(t, (n, 1)).astype(jnp.float32)

    # Fold the 2*pi factor into the (non-trainable) weights host-side.
    # (Rounding order differs slightly from the reference 2*pi*(t*w); within f32 tol.)
    w2pi = jnp.reshape((2.0 * math.pi) * w.astype(jnp.float32), (1, half))

    # ---- row-tile selection (generation-agnostic, VMEM-aware) --------------
    # Keep live blocks (double-buffered output + intermediates ~ 4 copies of a
    # tile) comfortably under the 32 MiB scoped VMEM budget (v7x has 64 MiB
    # physical / 32 MiB default scoped; v5e default scoped is only 16 MiB, so
    # we raise it explicitly below).
    vmem_live_budget = 16 << 20
    max_by_vmem = max(8, vmem_live_budget // (4 * dim * 4))
    tm = min(max_rows, max_by_vmem)
    tm = max(8, (tm // 8) * 8)
    if n >= 16:
        # Ensure >= 2 grid steps so both v7x TensorCores get work.
        tm = min(tm, _round_up(pl.cdiv(n, 2), 8))
    if n <= tm:
        tm = n                                   # single full block (== full dims)
    grid = (pl.cdiv(n, tm),)                     # partial last block masked by Pallas

    kernel = functools.partial(_gff_kernel, half=half, dim=dim)

    out = pl.pallas_call(
        kernel,
        out_shape=jax.ShapeDtypeStruct((n, dim), out_dtype),
        grid=grid,
        in_specs=[
            pl.BlockSpec((tm, 1), lambda i: (i, 0)),      # time-step tile
            pl.BlockSpec((1, half), lambda i: (0, 0)),    # weights (resident)
        ],
        out_specs=pl.BlockSpec((tm, dim), lambda i: (i, 0)),
        compiler_params=pltpu.CompilerParams(
            dimension_semantics=("parallel",),
            vmem_limit_bytes=32 << 20,
        ),
    )(t_flat, w2pi)

    out = out.reshape(*batch_shape, dim)
    return jnp.squeeze(out)                      # mirror torch `.squeeze()`


# -----------------------------------------------------------------------------
# Pure-JAX reference (mirrors the PyTorch forward exactly)
# -----------------------------------------------------------------------------
def gff_ref(t, w, dim):
    proj = 2.0 * math.pi * t[..., None] * w[None, ...]
    emb = jnp.concatenate([jnp.sin(proj), jnp.cos(proj)], axis=-1)
    if dim % 2:
        emb = jnp.concatenate([emb, jnp.zeros_like(emb[..., :1])], axis=-1)
    return jnp.squeeze(emb)


if __name__ == "__main__":
    key = jax.random.PRNGKey(0)
    kw, kt, kw2, kt2 = jax.random.split(key, 4)

    # --- main case: even dim, 1-D batch of time steps -----------------------
    dim, scale = 32, 10.0
    w = jax.random.normal(kw, (dim // 2,), jnp.float32) * scale
    t = jax.random.uniform(kt, (64,), jnp.float32)            # timesteps in [0, 1)

    out = gaussian_fourier_features(t, w, dim)
    out = jax.block_until_ready(out)
    ref = gff_ref(t, w, dim)
    assert out.shape == (64, dim), out.shape
    assert jnp.allclose(out, ref, rtol=1e-5, atol=1e-5), (
        float(jnp.max(jnp.abs(out - ref))))

    # --- odd dim + multi-dim batch (exercises flatten + zero column) --------
    dim2 = 33
    w2 = jax.random.normal(kw2, (dim2 // 2,), jnp.float32) * scale
    t2 = jax.random.uniform(kt2, (2, 8), jnp.float32)
    out2 = gaussian_fourier_features(t2, w2, dim2)
    out2 = jax.block_until_ready(out2)
    ref2 = gff_ref(t2, w2, dim2)
    assert out2.shape == (2, 8, dim2), out2.shape
    assert jnp.allclose(out2, ref2, rtol=1e-5, atol=1e-5), (
        float(jnp.max(jnp.abs(out2 - ref2))))

    print("KERNEL_OK")
</pallas_src>

<mosaic_0001>
module attributes {stable_mosaic.version = 11 : i64} {
  func.func @_gff_kernel(%arg0: i32, %arg1: memref<32x1xf32, #tpu.memory_space<vmem>>, %arg2: memref<1x16xf32, #tpu.memory_space<vmem>>, %arg3: memref<32x32xf32, #tpu.memory_space<vmem>>) attributes {dimension_semantics = [#tpu.dimension_semantics<parallel>], iteration_bounds = array<i64: 2>, scalar_prefetch = 0 : i64, scratch_operands = 0 : i64, tpu.core_type = #tpu.core_type<tc>, window_params = [{transform_indices = @transform_0, window_bounds = array<i64: 32, 1>}, {pipeline_mode = #tpu.pipeline_mode<synchronous>, transform_indices = @transform_1, window_bounds = array<i64: 1, 16>}, {transform_indices = @transform_2, window_bounds = array<i64: 32, 32>}]} {
    %c0 = arith.constant 0 : index
    %c0_0 = arith.constant 0 : index
    %0 = vector.load %arg1[%c0, %c0_0] : memref<32x1xf32, #tpu.memory_space<vmem>>, vector<32x1xf32>
    %c0_1 = arith.constant 0 : index
    %c0_2 = arith.constant 0 : index
    %1 = vector.load %arg2[%c0_1, %c0_2] : memref<1x16xf32, #tpu.memory_space<vmem>>, vector<1x16xf32>
    %2 = vector.broadcast %0 : vector<32x1xf32> to vector<32x16xf32>
    %3 = vector.broadcast %1 : vector<1x16xf32> to vector<32x16xf32>
    %4 = arith.mulf %2, %3 : vector<32x16xf32>
    %5 = math.sin %4 : vector<32x16xf32>
    %c0_3 = arith.constant 0 : index
    %c0_4 = arith.constant 0 : index
    %6 = vector.load %arg3[%c0_3, %c0_4] : memref<32x32xf32, #tpu.memory_space<vmem>>, vector<32x16xf32>
    tpu.vector_store %arg3[%c0_3, %c0_4], %5 {strides = array<i32>} : memref<32x32xf32, #tpu.memory_space<vmem>>, vector<32x16xf32>,
    %7 = math.cos %4 : vector<32x16xf32>
    %c0_5 = arith.constant 0 : index
    %c16 = arith.constant 16 : index
    %8 = vector.load %arg3[%c0_5, %c16] : memref<32x32xf32, #tpu.memory_space<vmem>>, vector<32x16xf32>
    tpu.vector_store %arg3[%c0_5, %c16], %7 {strides = array<i32>} : memref<32x32xf32, #tpu.memory_space<vmem>>, vector<32x16xf32>,
    return
  }
  func.func @transform_0(%arg0: i32) -> (i32, i32) {
    %c0_i32 = arith.constant 0 : i32
    %c0_i32_0 = arith.constant 0 : i32
    return %arg0, %c0_i32 : i32, i32
  }
  func.func @transform_1(%arg0: i32) -> (i32, i32) {
    %c0_i32 = arith.constant 0 : i32
    %c0_i32_0 = arith.constant 0 : i32
    %c0_i32_1 = arith.constant 0 : i32
    return %c0_i32, %c0_i32_0 : i32, i32
  }
  func.func @transform_2(%arg0: i32) -> (i32, i32) {
    %c0_i32 = arith.constant 0 : i32
    %c0_i32_0 = arith.constant 0 : i32
    return %arg0, %c0_i32 : i32, i32
  }
}

</mosaic_0001>

<llo_original>
// kernel: tpu_custom_call.1
$region0: #{tpu_custom_call.1}
  #allocation0 [shape = 'u32[]', space=smem, size = 0x4, offset = 0x4, fixed_abs, tag = 'smem constant byte address 0x4 - core index']
  #allocation1 [shape = 'u32[144,128]{1,0:T(1,128)}', space=vmem, size = 0x12000, scoped, tag = 'internal scratch']
  %s0 = inlined_call_operand.vmem [shape: f32[64,1], index: 0, kind: input, shape index: {}]
  %s1 = inlined_call_operand.vmem [shape: f32[1,16], index: 1, kind: input, shape index: {}]
  %s2 = inlined_call_operand.vmem [shape: f32[64,32], index: 2, kind: output, shape index: {}]
  %s3 = sld [smem:[#allocation0]]
  $region41: #{tpu_custom_call.1} parent=0
    _
  %s5 = ssub.s32 1, %s3
  %s6 = scalar_select 0, %s5, %s3
  loop: start=0, step=1, limit=4
  $region2: #{tpu_custom_call.1} parent=0 // loop_pre_header
    _
  $region3: #{tpu_custom_call.1} parent=0 // loop_header
    %s8 = sphi 0, %s12
    %p9 = scmp.ge.s32.totalorder %s8, 4
    %s18 = sphi 0, %s20
    %s21 = sphi 0, %s18
    %s22 = sphi 0, %s21
    %s38 = sphi 0, %s22
    %s42 = sphi 0, %s42
    %s44 = sphi 0, %s42
    %s45 = sphi 0, %s44
    %s59 = sphi 0, %s45
    %s65 = sphi 0, %s67
    %s68 = sphi 0, %s65
    %s69 = sphi 0, %s68
    %s85 = sphi 0, %s69
  $region4: #{tpu_custom_call.1} parent=0 // loop_header_branch
    %11 = sbr.rel (%p9) target = $region8
  $region5: #{tpu_custom_call.1} parent=0 // loop_body
    %s13 = ssub.s32 %s8, 1
    %s14 = ssub.s32 %s8, 2
    %s15 = sadd.s32 %s8, 1
    %s16 = ssub.s32 %s8, %s15
    %p17 = scmp.eq.s32.totalorder %s16, 0
    %s19 = sadd.s32 %s18, 1
    %s20 = scalar_select %p17, %s18, %s19
    %p23 = pneg %p17
    %p24 = scmp.eq.s32.totalorder %s8, 1
    %p25 = por %p23, %p24
    %p26 = scmp.ne.s32.totalorder %s18, %s21
    %p27 = scmp.eq.s32.totalorder %s8, 0
    %p28 = por %p26, %p27
    %p29 = scmp.ne.s32.totalorder %s18, %s21
    %p30 = scmp.eq.s32.totalorder %s13, 1
    %p31 = por %p29, %p30
    %p32 = scmp.ne.s32.totalorder %s21, %s22
    %p33 = scmp.eq.s32.totalorder %s13, 0
    %p34 = por %p32, %p33
    %p35 = scmp.ne.s32.totalorder %s21, %s22
    %p36 = scmp.eq.s32.totalorder %s14, 1
    %p37 = por %p35, %p36
    %p39 = scmp.ne.s32.totalorder %s22, %s38
    %p40 = scmp.eq.s32.totalorder %s14, 0
    %p41 = por %p39, %p40
    %s43 = sadd.s32 %s42, 1
    %p46 = scmp.eq.s32.totalorder %s8, 1
    %p47 = scmp.ne.s32.totalorder %s42, %s44
    %p48 = scmp.eq.s32.totalorder %s8, 0
    %p49 = por %p47, %p48
    %p50 = scmp.ne.s32.totalorder %s42, %s44
    %p51 = scmp.eq.s32.totalorder %s13, 1
    %p52 = por %p50, %p51
    %p53 = scmp.ne.s32.totalorder %s44, %s45
    %p54 = scmp.eq.s32.totalorder %s13, 0
    %p55 = por %p53, %p54
    %p56 = scmp.ne.s32.totalorder %s44, %s45
    %p57 = scmp.eq.s32.totalorder %s14, 1
    %p58 = por %p56, %p57
    %p60 = scmp.ne.s32.totalorder %s45, %s59
    %p61 = scmp.eq.s32.totalorder %s14, 0
    %p62 = por %p60, %p61
    %s63 = ssub.s32 %s8, %s15
    %p64 = scmp.eq.s32.totalorder %s63, 0
    %s66 = sadd.s32 %s65, 1
    %s67 = scalar_select %p64, %s65, %s66
    %p70 = pneg %p64
    %p71 = scmp.eq.s32.totalorder %s8, 1
    %p72 = por %p70, %p71
    %p73 = scmp.ne.s32.totalorder %s65, %s68
    %p74 = scmp.eq.s32.totalorder %s8, 0
    %p75 = por %p73, %p74
    %p76 = scmp.ne.s32.totalorder %s65, %s68
    %p77 = scmp.eq.s32.totalorder %s13, 1
    %p78 = por %p76, %p77
    %p79 = scmp.ne.s32.totalorder %s68, %s69
    %p80 = scmp.eq.s32.totalorder %s13, 0
    %p81 = por %p79, %p80
    %p82 = scmp.ne.s32.totalorder %s68, %s69
    %p83 = scmp.eq.s32.totalorder %s14, 1
    %p84 = por %p82, %p83
    %p86 = scmp.ne.s32.totalorder %s69, %s85
    %p87 = scmp.eq.s32.totalorder %s14, 0
    %p88 = por %p86, %p87
    %p89 = scmp.le.s32.totalorder 1, %s8
    %p90 = scmp.lt.s32.totalorder %s8, 3
    %p91 = pnand %p89, %p90
    %p92 = pneg %p91
    // Predicated region
    $region9: #{tpu_custom_call.1} parent=5 // pred_check
      _
    $region10: #{tpu_custom_call.1} parent=5 // pred_check_branch
      %94 = sbr.rel (%p91) target = $region12
    $region11: #{tpu_custom_call.1} parent=5 // pred_region
      %s95 = ssub.s32 %s8, 1
      // Predicated region
      $region13: #{tpu_custom_call.1} parent=11 // pred_check
        %p96 = pneg %p55
      $region14: #{tpu_custom_call.1} parent=11 // pred_check_branch
        %98 = sbr.rel (%p96) target = $region16
      $region15: #{tpu_custom_call.1} parent=11 // pred_region
        _
      $region16: #{tpu_custom_call.1} parent=11 // pred_fallthru
        _
    $region12: #{tpu_custom_call.1} parent=5 // pred_fallthru
      _
    %p99 = scmp.lt.s32.totalorder %s8, 2
    // Predicated region
    $region17: #{tpu_custom_call.1} parent=5 // pred_check
      %p100 = pneg %p99
    $region18: #{tpu_custom_call.1} parent=5 // pred_check_branch
      %102 = sbr.rel (%p100) target = $region20
    $region19: #{tpu_custom_call.1} parent=5 // pred_region
      // Predicated region
      $region21: #{tpu_custom_call.1} parent=19 // pred_check
        %p103 = pneg %p28
      $region22: #{tpu_custom_call.1} parent=19 // pred_check_branch
        %105 = sbr.rel (%p103) target = $region24
      $region23: #{tpu_custom_call.1} parent=19 // pred_region
        %s106 = smul.u32 4, %s8
        %p107 = scmp.lt.s32.totalorder %s106, 7
        %s108 = scalar_select %p107, %s106, 7
        %s109 = smul.addr %s108, 8
        %s110 = scalar_lea.vmem %s0, %s109
        %s111 = smul.u32 4, %s8
      $region24: #{tpu_custom_call.1} parent=19 // pred_fallthru
        _
    $region20: #{tpu_custom_call.1} parent=5 // pred_fallthru
      _
    %p112 = scmp.le.s32.totalorder 1, %s8
    %p113 = scmp.lt.s32.totalorder %s8, 3
    %p114 = pnand %p112, %p113
    %p115 = pneg %p114
    // Predicated region
    $region25: #{tpu_custom_call.1} parent=5 // pred_check
      _
    $region26: #{tpu_custom_call.1} parent=5 // pred_check_branch
      %117 = sbr.rel (%p114) target = $region28
    $region27: #{tpu_custom_call.1} parent=5 // pred_region
      %s118 = ssub.s32 %s8, 1
      %s119 = smul.u32 4, %s13
      %p120 = scmp.lt.s32.totalorder %s119, 7
      %s121 = scalar_select %p120, %s119, 7
      %s122 = smul.addr %s121, 8
      %s123 = scalar_lea.vmem %s0, %s122
      %p124 = pneg %p34
      %p125 = pneg %p31
      %p126 = pneg %p55
      %p127 = pneg %p52
      %p128 = pneg %p81
      %p129 = pneg %p78
      %s130 = smul.u32 4, %s13
      %p131 = scmp.lt.s32.totalorder %s130, 7
      %s132 = scalar_select %p131, %s130, 7
      %s133 = smul.addr %s132, 8
      %s134 = scalar_lea.vmem %s2, %s133
      %s135 = smul.u32 4, %s13
      %p136 = scmp.lt.s32.totalorder %s135, 7
      %s137 = scalar_select %p136, %s135, 7
      %s138 = smul.addr %s137, 8
      %s139 = scalar_lea.vmem %s0, %s138
      %s140 = smul.u32 4, %s13
      %s141 = smul.u32 4, %s13
      %p142 = scmp.lt.s32.totalorder %s141, 7
      %s143 = scalar_select %p142, %s141, 7
      %s144 = smul.addr %s143, 8
      %s145 = scalar_lea.vmem %s2, %s144
      %s146 = smul.u32 4, %s13
      %v147 = vld [vmem:[%s139] sm:$0xff]
      %v148 = vld [vmem:[%s139 + $0x8] sm:$0xff]
      %v149 = vld [vmem:[%s139 + $0x10] sm:$0xff]
      %v150 = vld [vmem:[%s139 + $0x18] sm:$0xff]
      %v151 = vld [vmem:[%s1] sm:$0x1]
      %153 = vset.pattern.permute.xlu0 0
      %154 = vperm.xlu0 %153, %v147
      %v155 = vpop.permute.xlu0 %154
      %158 = vset.pattern.permute.xlu0 0
      %159 = vperm.xlu0 %158, %v148
      %v160 = vpop.permute.xlu0 %159
      %163 = vset.pattern.permute.xlu0 0
      %164 = vperm.xlu0 %163, %v149
      %v165 = vpop.permute.xlu0 %164
      %168 = vset.pattern.permute.xlu0 0
      %169 = vperm.xlu0 %168, %v150
      %v170 = vpop.permute.xlu0 %169
      %v173 = vlaneseq
      %v174 = vshrl.u32 %v173, 7
      %v175 = vsub.s32 0, %v174
      %v176 = vrot.slane %v151, %v175
      %v178 = vmul.f32 %v155, %v176
      %v179 = vmul.f32 %v160, %v176
      %v180 = vmul.f32 %v165, %v176
      %v181 = vmul.f32 %v170, %v176
      %v182 = vand.u32 2147483647, %v178
      %vm183 = vcmp.le.f32.partialorder %v182, 0.7853982
      %vm184 = vcmp.lt.s32.totalorder %v178, 0
      %v185 = vand.u32 %v178, 2139095040
      %v186 = vshrl.u32 %v185, 23
      %v187 = vsub.s32 %v186, 127
      %v188 = vand.u32 2147483647, %v178
      %v189 = vand.u32 %v188, 8388607
      %v190 = vor.u32 %v189, 8388608
      %v191 = vsub.s32 0, %v190
      %v192 = vadd.s32 %v187, 1
      %vm193 = vcmp.gt.s32.totalorder %v192, 0
      %v194 = vsel %vm193, %v192, 0
      %v195 = vshrl.u32 %v194, 5
      %v196 = vand.u32 %v194, 31
      %v197 = vsub.s32 32, %v196
      %v198 = vshrl.u32 683565275, %v197
      %v199 = vshll.u32 683565275, %v196
      %v200 = vshrl.u32 2475754826, %v197
      %v201 = vor.u32 %v199, %v200
      %v202 = vshll.u32 2475754826, %v196
      %v203 = vshrl.u32 2131351028, %v197
      %v204 = vor.u32 %v202, %v203
      %v205 = vshll.u32 2131351028, %v196
      %v206 = vshrl.u32 2102212464, %v197
      %v207 = vor.u32 %v205, %v206
      %v208 = vshll.u32 2102212464, %v196
      %v209 = vshrl.u32 920167782, %v197
      %v210 = vor.u32 %v208, %v209
      %v211 = vshll.u32 920167782, %v196
      %v212 = vshrl.u32 1326507024, %v197
      %v213 = vor.u32 %v211, %v212
      %vm214 = vcmp.lt.s32.totalorder %v195, 1
      %vm215 = vcmp.lt.s32.totalorder %v195, 2
      %vm216 = vcmp.lt.s32.totalorder %v195, 3
      %vm217 = vcmp.lt.s32.totalorder %v195, 4
      %v218 = vsel %vm214, %v198, %v201
      %v219 = vsel %vm217, %v207, 2102212464
      %v220 = vsel %vm216, %v204, %v219
      %v221 = vsel %vm215, %v218, %v220
      %v222 = vsel %vm214, %v201, %v204
      %v223 = vsel %vm217, %v210, 920167782
      %v224 = vsel %vm216, %v207, %v223
      %v225 = vsel %vm215, %v222, %v224
      %v226 = vsel %vm214, %v204, %v207
      %v227 = vsel %vm217, %v213, 1326507024
      %v228 = vsel %vm216, %v210, %v227
      %v229 = vsel %vm215, %v226, %v228
      %v230 = vshll.u32 %v190, 8
      %v231 = vmul.u32.u64.compose %v230, %v229
      %v232 = vextract.low.u32 %v231
      %v233 = vextract.high.u32 %v231
      %v234 = vmul.u32.u64.compose %v230, %v225
      %v235 = vextract.low.u32 %v234
      %v236 = vextract.high.u32 %v234
      %v237 = vmul.u32 %v230, %v221
      %v238 = vadd.s32 %v233, %v235
      %vm239 = vc.u32 %v233, %v235
      %v240 = vadd.s32 %v236, 1
      %v241 = vsel %vm239, %v240, %v236
      %v242 = vadd.s32 %v237, %v241
      %v243 = vadd.s32 %v242, 536870912
      %v244 = vshrl.u32 %v243, 30
      %v245 = vshll.u32 %v244, 30
      %v246 = vsub.s32 %v242, %v245
      %vm247 = vcmp.lt.s32.totalorder %v246, 0
      %v248 = vsub.s32 0, %v246
      %v249 = vsel %vm247, %v248, %v246
      %v250 = vclz %v249
      %v251 = vsub.s32 %v250, 2
      %vm252 = vcmp.gt.s32.totalorder 0, %v251
      %v253 = vsel %vm252, 0, %v251
      %v254 = vsub.s32 32, %v253
      %v255 = vshll.u32 %v246, %v253
      %v256 = vshrl.u32 %v238, %v254
      %v257 = vor.u32 %v255, %v256
      %v258 = vsub.s32 4294967266, %v253
      %v259 = vadd.s32 %v258, 127
      %v260 = vshll.u32 %v259, 23
      %v261 = vor.u32 4788187, %v260
      %v262 = vand.u32 2147483647, %v261
      %v264 = vcvt.s32.f32 %v257
      %v265 = vmul.f32 %v264, %v262
      %v266 = vxor.u32 %v265, 2147483648
      %v267 = vsel %vm184, %v266, %v265
      %v268 = vsub.s32 4, %v244
      %v269 = vsel %vm184, %v268, %v244
      %v270 = vsel %vm183, %v178, %v267
      %v271 = vsel %vm183, 0, %v269
      %v272 = vcosq.f32.pop %v270
      %v273 = vsinq.f32.pop %v270
      %vm274 = vweird.f32 %v178
      %v275 = vadd.s32 %v271, 3
      %v276 = vand.u32 %v275, 3
      %vm277 = vcmp.lt.s32.totalorder %v276, 2
      %vm278 = vcmp.eq.s32.totalorder %v276, 0
      %v279 = vxor.u32 %v273, 2147483648
      %v280 = vsel %vm278, %v272, %v279
      %vm281 = vcmp.eq.s32.totalorder %v276, 2
      %v282 = vxor.u32 %v272, 2147483648
      %v283 = vsel %vm281, %v282, %v273
      %v284 = vsel %vm277, %v280, %v283
      %v285 = vsel %vm274, nan, %v284
      %v286 = vand.u32 2147483647, %v179
      %vm287 = vcmp.le.f32.partialorder %v286, 0.7853982
      %vm288 = vcmp.lt.s32.totalorder %v179, 0
      %v289 = vand.u32 %v179, 2139095040
      %v290 = vshrl.u32 %v289, 23
      %v291 = vsub.s32 %v290, 127
      %v292 = vand.u32 2147483647, %v179
      %v293 = vand.u32 %v292, 8388607
      %v294 = vor.u32 %v293, 8388608
      %v295 = vsub.s32 0, %v294
      %v296 = vadd.s32 %v291, 1
      %vm297 = vcmp.gt.s32.totalorder %v296, 0
      %v298 = vsel %vm297, %v296, 0
      %v299 = vshrl.u32 %v298, 5
      %v300 = vand.u32 %v298, 31
      %v301 = vsub.s32 32, %v300
      %v302 = vshrl.u32 683565275, %v301
      %v303 = vshll.u32 683565275, %v300
      %v304 = vshrl.u32 2475754826, %v301
      %v305 = vor.u32 %v303, %v304
      %v306 = vshll.u32 2475754826, %v300
      %v307 = vshrl.u32 2131351028, %v301
      %v308 = vor.u32 %v306, %v307
      %v309 = vshll.u32 2131351028, %v300
      %v310 = vshrl.u32 2102212464, %v301
      %v311 = vor.u32 %v309, %v310
      %v312 = vshll.u32 2102212464, %v300
      %v313 = vshrl.u32 920167782, %v301
      %v314 = vor.u32 %v312, %v313
      %v315 = vshll.u32 920167782, %v300
      %v316 = vshrl.u32 1326507024, %v301
      %v317 = vor.u32 %v315, %v316
      %vm318 = vcmp.lt.s32.totalorder %v299, 1
      %vm319 = vcmp.lt.s32.totalorder %v299, 2
      %vm320 = vcmp.lt.s32.totalorder %v299, 3
      %vm321 = vcmp.lt.s32.totalorder %v299, 4
      %v322 = vsel %vm318, %v302, %v305
      %v323 = vsel %vm321, %v311, 2102212464
      %v324 = vsel %vm320, %v308, %v323
      %v325 = vsel %vm319, %v322, %v324
      %v326 = vsel %vm318, %v305, %v308
      %v327 = vsel %vm321, %v314, 920167782
      %v328 = vsel %vm320, %v311, %v327
      %v329 = vsel %vm319, %v326, %v328
      %v330 = vsel %vm318, %v308, %v311
      %v331 = vsel %vm321, %v317, 1326507024
      %v332 = vsel %vm320, %v314, %v331
      %v333 = vsel %vm319, %v330, %v332
      %v334 = vshll.u32 %v294, 8
      %v335 = vmul.u32.u64.compose %v334, %v333
      %v336 = vextract.low.u32 %v335
      %v337 = vextract.high.u32 %v335
      %v338 = vmul.u32.u64.compose %v334, %v329
      %v339 = vextract.low.u32 %v338
      %v340 = vextract.high.u32 %v338
      %v341 = vmul.u32 %v334, %v325
      %v342 = vadd.s32 %v337, %v339
      %vm343 = vc.u32 %v337, %v339
      %v344 = vadd.s32 %v340, 1
      %v345 = vsel %vm343, %v344, %v340
      %v346 = vadd.s32 %v341, %v345
      %v347 = vadd.s32 %v346, 536870912
      %v348 = vshrl.u32 %v347, 30
      %v349 = vshll.u32 %v348, 30
      %v350 = vsub.s32 %v346, %v349
      %vm351 = vcmp.lt.s32.totalorder %v350, 0
      %v352 = vsub.s32 0, %v350
      %v353 = vsel %vm351, %v352, %v350
      %v354 = vclz %v353
      %v355 = vsub.s32 %v354, 2
      %vm356 = vcmp.gt.s32.totalorder 0, %v355
      %v357 = vsel %vm356, 0, %v355
      %v358 = vsub.s32 32, %v357
      %v359 = vshll.u32 %v350, %v357
      %v360 = vshrl.u32 %v342, %v358
      %v361 = vor.u32 %v359, %v360
      %v362 = vsub.s32 4294967266, %v357
      %v363 = vadd.s32 %v362, 127
      %v364 = vshll.u32 %v363, 23
      %v365 = vor.u32 4788187, %v364
      %v366 = vand.u32 2147483647, %v365
      %v368 = vcvt.s32.f32 %v361
      %v369 = vmul.f32 %v368, %v366
      %v370 = vxor.u32 %v369, 2147483648
      %v371 = vsel %vm288, %v370, %v369
      %v372 = vsub.s32 4, %v348
      %v373 = vsel %vm288, %v372, %v348
      %v374 = vsel %vm287, %v179, %v371
      %v375 = vsel %vm287, 0, %v373
      %v376 = vcosq.f32.pop %v374
      %v377 = vsinq.f32.pop %v374
      %vm378 = vweird.f32 %v179
      %v379 = vadd.s32 %v375, 3
      %v380 = vand.u32 %v379, 3
      %vm381 = vcmp.lt.s32.totalorder %v380, 2
      %vm382 = vcmp.eq.s32.totalorder %v380, 0
      %v383 = vxor.u32 %v377, 2147483648
      %v384 = vsel %vm382, %v376, %v383
      %vm385 = vcmp.eq.s32.totalorder %v380, 2
      %v386 = vxor.u32 %v376, 2147483648
      %v387 = vsel %vm385, %v386, %v377
      %v388 = vsel %vm381, %v384, %v387
      %v389 = vsel %vm378, nan, %v388
      %v390 = vand.u32 2147483647, %v180
      %vm391 = vcmp.le.f32.partialorder %v390, 0.7853982
      %vm392 = vcmp.lt.s32.totalorder %v180, 0
      %v393 = vand.u32 %v180, 2139095040
      %v394 = vshrl.u32 %v393, 23
      %v395 = vsub.s32 %v394, 127
      %v396 = vand.u32 2147483647, %v180
      %v397 = vand.u32 %v396, 8388607
      %v398 = vor.u32 %v397, 8388608
      %v399 = vsub.s32 0, %v398
      %v400 = vadd.s32 %v395, 1
      %vm401 = vcmp.gt.s32.totalorder %v400, 0
      %v402 = vsel %vm401, %v400, 0
      %v403 = vshrl.u32 %v402, 5
      %v404 = vand.u32 %v402, 31
      %v405 = vsub.s32 32, %v404
      %v406 = vshrl.u32 683565275, %v405
      %v407 = vshll.u32 683565275, %v404
      %v408 = vshrl.u32 2475754826, %v405
      %v409 = vor.u32 %v407, %v408
      %v410 = vshll.u32 2475754826, %v404
      %v411 = vshrl.u32 2131351028, %v405
      %v412 = vor.u32 %v410, %v411
      %v413 = vshll.u32 2131351028, %v404
      %v414 = vshrl.u32 2102212464, %v405
      %v415 = vor.u32 %v413, %v414
      %v416 = vshll.u32 2102212464, %v404
      %v417 = vshrl.u32 920167782, %v405
      %v418 = vor.u32 %v416, %v417
      %v419 = vshll.u32 920167782, %v404
      %v420 = vshrl.u32 1326507024, %v405
      %v421 = vor.u32 %v419, %v420
      %vm422 = vcmp.lt.s32.totalorder %v403, 1
      %vm423 = vcmp.lt.s32.totalorder %v403, 2
      %vm424 = vcmp.lt.s32.totalorder %v403, 3
      %vm425 = vcmp.lt.s32.totalorder %v403, 4
      %v426 = vsel %vm422, %v406, %v409
      %v427 = vsel %vm425, %v415, 2102212464
      %v428 = vsel %vm424, %v412, %v427
      %v429 = vsel %vm423, %v426, %v428
      %v430 = vsel %vm422, %v409, %v412
      %v431 = vsel %vm425, %v418, 920167782
      %v432 = vsel %vm424, %v415, %v431
      %v433 = vsel %vm423, %v430, %v432
      %v434 = vsel %vm422, %v412, %v415
      %v435 = vsel %vm425, %v421, 1326507024
      %v436 = vsel %vm424, %v418, %v435
      %v437 = vsel %vm423, %v434, %v436
      %v438 = vshll.u32 %v398, 8
      %v439 = vmul.u32.u64.compose %v438, %v437
      %v440 = vextract.low.u32 %v439
      %v441 = vextract.high.u32 %v439
      %v442 = vmul.u32.u64.compose %v438, %v433
      %v443 = vextract.low.u32 %v442
      %v444 = vextract.high.u32 %v442
      %v445 = vmul.u32 %v438, %v429
      %v446 = vadd.s32 %v441, %v443
      %vm447 = vc.u32 %v441, %v443
      %v448 = vadd.s32 %v444, 1
      %v449 = vsel %vm447, %v448, %v444
      %v450 = vadd.s32 %v445, %v449
      %v451 = vadd.s32 %v450, 536870912
      %v452 = vshrl.u32 %v451, 30
      %v453 = vshll.u32 %v452, 30
      %v454 = vsub.s32 %v450, %v453
      %vm455 = vcmp.lt.s32.totalorder %v454, 0
      %v456 = vsub.s32 0, %v454
      %v457 = vsel %vm455, %v456, %v454
      %v458 = vclz %v457
      %v459 = vsub.s32 %v458, 2
      %vm460 = vcmp.gt.s32.totalorder 0, %v459
      %v461 = vsel %vm460, 0, %v459
      %v462 = vsub.s32 32, %v461
      %v463 = vshll.u32 %v454, %v461
      %v464 = vshrl.u32 %v446, %v462
      %v465 = vor.u32 %v463, %v464
      %v466 = vsub.s32 4294967266, %v461
      %v467 = vadd.s32 %v466, 127
      %v468 = vshll.u32 %v467, 23
      %v469 = vor.u32 4788187, %v468
      %v470 = vand.u32 2147483647, %v469
      %v472 = vcvt.s32.f32 %v465
      %v473 = vmul.f32 %v472, %v470
      %v474 = vxor.u32 %v473, 2147483648
      %v475 = vsel %vm392, %v474, %v473
      %v476 = vsub.s32 4, %v452
      %v477 = vsel %vm392, %v476, %v452
      %v478 = vsel %vm391, %v180, %v475
      %v479 = vsel %vm391, 0, %v477
      %v480 = vcosq.f32.pop %v478
      %v481 = vsinq.f32.pop %v478
      %vm482 = vweird.f32 %v180
      %v483 = vadd.s32 %v479, 3
      %v484 = vand.u32 %v483, 3
      %vm485 = vcmp.lt.s32.totalorder %v484, 2
      %vm486 = vcmp.eq.s32.totalorder %v484, 0
      %v487 = vxor.u32 %v481, 2147483648
      %v488 = vsel %vm486, %v480, %v487
      %vm489 = vcmp.eq.s32.totalorder %v484, 2
      %v490 = vxor.u32 %v480, 2147483648
      %v491 = vsel %vm489, %v490, %v481
      %v492 = vsel %vm485, %v488, %v491
      %v493 = vsel %vm482, nan, %v492
      %v494 = vand.u32 2147483647, %v181
      %vm495 = vcmp.le.f32.partialorder %v494, 0.7853982
      %vm496 = vcmp.lt.s32.totalorder %v181, 0
      %v497 = vand.u32 %v181, 2139095040
      %v498 = vshrl.u32 %v497, 23
      %v499 = vsub.s32 %v498, 127
      %v500 = vand.u32 2147483647, %v181
      %v501 = vand.u32 %v500, 8388607
      %v502 = vor.u32 %v501, 8388608
      %v503 = vsub.s32 0, %v502
      %v504 = vadd.s32 %v499, 1
      %vm505 = vcmp.gt.s32.totalorder %v504, 0
      %v506 = vsel %vm505, %v504, 0
      %v507 = vshrl.u32 %v506, 5
      %v508 = vand.u32 %v506, 31
      %v509 = vsub.s32 32, %v508
      %v510 = vshrl.u32 683565275, %v509
      %v511 = vshll.u32 683565275, %v508
      %v512 = vshrl.u32 2475754826, %v509
      %v513 = vor.u32 %v511, %v512
      %v514 = vshll.u32 2475754826, %v508
      %v515 = vshrl.u32 2131351028, %v509
      %v516 = vor.u32 %v514, %v515
      %v517 = vshll.u32 2131351028, %v508
      %v518 = vshrl.u32 2102212464, %v509
      %v519 = vor.u32 %v517, %v518
      %v520 = vshll.u32 2102212464, %v508
      %v521 = vshrl.u32 920167782, %v509
      %v522 = vor.u32 %v520, %v521
      %v523 = vshll.u32 920167782, %v508
      %v524 = vshrl.u32 1326507024, %v509
      %v525 = vor.u32 %v523, %v524
      %vm526 = vcmp.lt.s32.totalorder %v507, 1
      %vm527 = vcmp.lt.s32.totalorder %v507, 2
      %vm528 = vcmp.lt.s32.totalorder %v507, 3
      %vm529 = vcmp.lt.s32.totalorder %v507, 4
      %v530 = vsel %vm526, %v510, %v513
      %v531 = vsel %vm529, %v519, 2102212464
      %v532 = vsel %vm528, %v516, %v531
      %v533 = vsel %vm527, %v530, %v532
      %v534 = vsel %vm526, %v513, %v516
      %v535 = vsel %vm529, %v522, 920167782
      %v536 = vsel %vm528, %v519, %v535
      %v537 = vsel %vm527, %v534, %v536
      %v538 = vsel %vm526, %v516, %v519
      %v539 = vsel %vm529, %v525, 1326507024
      %v540 = vsel %vm528, %v522, %v539
      %v541 = vsel %vm527, %v538, %v540
      %v542 = vshll.u32 %v502, 8
      %v543 = vmul.u32.u64.compose %v542, %v541
      %v544 = vextract.low.u32 %v543
      %v545 = vextract.high.u32 %v543
      %v546 = vmul.u32.u64.compose %v542, %v537
      %v547 = vextract.low.u32 %v546
      %v548 = vextract.high.u32 %v546
      %v549 = vmul.u32 %v542, %v533
      %v550 = vadd.s32 %v545, %v547
      %vm551 = vc.u32 %v545, %v547
      %v552 = vadd.s32 %v548, 1
      %v553 = vsel %vm551, %v552, %v548
      %v554 = vadd.s32 %v549, %v553
      %v555 = vadd.s32 %v554, 536870912
      %v556 = vshrl.u32 %v555, 30
      %v557 = vshll.u32 %v556, 30
      %v558 = vsub.s32 %v554, %v557
      %vm559 = vcmp.lt.s32.totalorder %v558, 0
      %v560 = vsub.s32 0, %v558
      %v561 = vsel %vm559, %v560, %v558
      %v562 = vclz %v561
      %v563 = vsub.s32 %v562, 2
      %vm564 = vcmp.gt.s32.totalorder 0, %v563
      %v565 = vsel %vm564, 0, %v563
      %v566 = vsub.s32 32, %v565
      %v567 = vshll.u32 %v558, %v565
      %v568 = vshrl.u32 %v550, %v566
      %v569 = vor.u32 %v567, %v568
      %v570 = vsub.s32 4294967266, %v565
      %v571 = vadd.s32 %v570, 127
      %v572 = vshll.u32 %v571, 23
      %v573 = vor.u32 4788187, %v572
      %v574 = vand.u32 2147483647, %v573
      %v576 = vcvt.s32.f32 %v569
      %v577 = vmul.f32 %v576, %v574
      %v578 = vxor.u32 %v577, 2147483648
      %v579 = vsel %vm496, %v578, %v577
      %v580 = vsub.s32 4, %v556
      %v581 = vsel %vm496, %v580, %v556
      %v582 = vsel %vm495, %v181, %v579
      %v583 = vsel %vm495, 0, %v581
      %v584 = vcosq.f32.pop %v582
      %v585 = vsinq.f32.pop %v582
      %vm586 = vweird.f32 %v181
      %v587 = vadd.s32 %v583, 3
      %v588 = vand.u32 %v587, 3
      %vm589 = vcmp.lt.s32.totalorder %v588, 2
      %vm590 = vcmp.eq.s32.totalorder %v588, 0
      %v591 = vxor.u32 %v585, 2147483648
      %v592 = vsel %vm590, %v584, %v591
      %vm593 = vcmp.eq.s32.totalorder %v588, 2
      %v594 = vxor.u32 %v584, 2147483648
      %v595 = vsel %vm593, %v594, %v585
      %v596 = vsel %vm589, %v592, %v595
      %v597 = vsel %vm586, nan, %v596
      %vm598 = vcmask 130048
      %599 = vst.msk [vmem:[%s145] sm:$0xff] %vm598, %v285
      %600 = vst.msk [vmem:[%s145 + $0x8] sm:$0xff] %vm598, %v389
      %601 = vst.msk [vmem:[%s145 + $0x10] sm:$0xff] %vm598, %v493
      %602 = vst.msk [vmem:[%s145 + $0x18] sm:$0xff] %vm598, %v597
      %v603 = vand.u32 2147483647, %v178
      %vm604 = vcmp.le.f32.partialorder %v603, 0.7853982
      %vm605 = vcmp.lt.s32.totalorder %v178, 0
      %v606 = vand.u32 %v178, 2139095040
      %v607 = vshrl.u32 %v606, 23
      %v608 = vsub.s32 %v607, 127
      %v609 = vand.u32 2147483647, %v178
      %v610 = vand.u32 %v609, 8388607
      %v611 = vor.u32 %v610, 8388608
      %v612 = vsub.s32 0, %v611
      %v613 = vadd.s32 %v608, 1
      %vm614 = vcmp.gt.s32.totalorder %v613, 0
      %v615 = vsel %vm614, %v613, 0
      %v616 = vshrl.u32 %v615, 5
      %v617 = vand.u32 %v615, 31
      %v618 = vsub.s32 32, %v617
      %v619 = vshrl.u32 683565275, %v618
      %v620 = vshll.u32 683565275, %v617
      %v621 = vshrl.u32 2475754826, %v618
      %v622 = vor.u32 %v620, %v621
      %v623 = vshll.u32 2475754826, %v617
      %v624 = vshrl.u32 2131351028, %v618
      %v625 = vor.u32 %v623, %v624
      %v626 = vshll.u32 2131351028, %v617
      %v627 = vshrl.u32 2102212464, %v618
      %v628 = vor.u32 %v626, %v627
      %v629 = vshll.u32 2102212464, %v617
      %v630 = vshrl.u32 920167782, %v618
      %v631 = vor.u32 %v629, %v630
      %v632 = vshll.u32 920167782, %v617
      %v633 = vshrl.u32 1326507024, %v618
      %v634 = vor.u32 %v632, %v633
      %vm635 = vcmp.lt.s32.totalorder %v616, 1
      %vm636 = vcmp.lt.s32.totalorder %v616, 2
      %vm637 = vcmp.lt.s32.totalorder %v616, 3
      %vm638 = vcmp.lt.s32.totalorder %v616, 4
      %v639 = vsel %vm635, %v619, %v622
      %v640 = vsel %vm638, %v628, 2102212464
      %v641 = vsel %vm637, %v625, %v640
      %v642 = vsel %vm636, %v639, %v641
      %v643 = vsel %vm635, %v622, %v625
      %v644 = vsel %vm638, %v631, 920167782
      %v645 = vsel %vm637, %v628, %v644
      %v646 = vsel %vm636, %v643, %v645
      %v647 = vsel %vm635, %v625, %v628
      %v648 = vsel %vm638, %v634, 1326507024
      %v649 = vsel %vm637, %v631, %v648
      %v650 = vsel %vm636, %v647, %v649
      %v651 = vshll.u32 %v611, 8
      %v652 = vmul.u32.u64.compose %v651, %v650
      %v653 = vextract.low.u32 %v652
      %v654 = vextract.high.u32 %v652
      %v655 = vmul.u32.u64.compose %v651, %v646
      %v656 = vextract.low.u32 %v655
      %v657 = vextract.high.u32 %v655
      %v658 = vmul.u32 %v651, %v642
      %v659 = vadd.s32 %v654, %v656
      %vm660 = vc.u32 %v654, %v656
      %v661 = vadd.s32 %v657, 1
      %v662 = vsel %vm660, %v661, %v657
      %v663 = vadd.s32 %v658, %v662
      %v664 = vadd.s32 %v663, 536870912
      %v665 = vshrl.u32 %v664, 30
      %v666 = vshll.u32 %v665, 30
      %v667 = vsub.s32 %v663, %v666
      %vm668 = vcmp.lt.s32.totalorder %v667, 0
      %v669 = vsub.s32 0, %v667
      %v670 = vsel %vm668, %v669, %v667
      %v671 = vclz %v670
      %v672 = vsub.s32 %v671, 2
      %vm673 = vcmp.gt.s32.totalorder 0, %v672
      %v674 = vsel %vm673, 0, %v672
      %v675 = vsub.s32 32, %v674
      %v676 = vshll.u32 %v667, %v674
      %v677 = vshrl.u32 %v659, %v675
      %v678 = vor.u32 %v676, %v677
      %v679 = vsub.s32 4294967266, %v674
      %v680 = vadd.s32 %v679, 127
      %v681 = vshll.u32 %v680, 23
      %v682 = vor.u32 4788187, %v681
      %v683 = vand.u32 2147483647, %v682
      %v685 = vcvt.s32.f32 %v678
      %v686 = vmul.f32 %v685, %v683
      %v687 = vxor.u32 %v686, 2147483648
      %v688 = vsel %vm605, %v687, %v686
      %v689 = vsub.s32 4, %v665
      %v690 = vsel %vm605, %v689, %v665
      %v691 = vsel %vm604, %v178, %v688
      %v692 = vsel %vm604, 0, %v690
      %v693 = vcosq.f32.pop %v691
      %v694 = vsinq.f32.pop %v691
      %vm695 = vweird.f32 %v178
      %v696 = vand.u32 %v692, 3
      %vm697 = vcmp.lt.s32.totalorder %v696, 2
      %vm698 = vcmp.eq.s32.totalorder %v696, 0
      %v699 = vxor.u32 %v694, 2147483648
      %v700 = vsel %vm698, %v693, %v699
      %vm701 = vcmp.eq.s32.totalorder %v696, 2
      %v702 = vxor.u32 %v693, 2147483648
      %v703 = vsel %vm701, %v702, %v694
      %v704 = vsel %vm697, %v700, %v703
      %v705 = vsel %vm695, nan, %v704
      %v706 = vand.u32 2147483647, %v179
      %vm707 = vcmp.le.f32.partialorder %v706, 0.7853982
      %vm708 = vcmp.lt.s32.totalorder %v179, 0
      %v709 = vand.u32 %v179, 2139095040
      %v710 = vshrl.u32 %v709, 23
      %v711 = vsub.s32 %v710, 127
      %v712 = vand.u32 2147483647, %v179
      %v713 = vand.u32 %v712, 8388607
      %v714 = vor.u32 %v713, 8388608
      %v715 = vsub.s32 0, %v714
      %v716 = vadd.s32 %v711, 1
      %vm717 = vcmp.gt.s32.totalorder %v716, 0
      %v718 = vsel %vm717, %v716, 0
      %v719 = vshrl.u32 %v718, 5
      %v720 = vand.u32 %v718, 31
      %v721 = vsub.s32 32, %v720
      %v722 = vshrl.u32 683565275, %v721
      %v723 = vshll.u32 683565275, %v720
      %v724 = vshrl.u32 2475754826, %v721
      %v725 = vor.u32 %v723, %v724
      %v726 = vshll.u32 2475754826, %v720
      %v727 = vshrl.u32 2131351028, %v721
      %v728 = vor.u32 %v726, %v727
      %v729 = vshll.u32 2131351028, %v720
      %v730 = vshrl.u32 2102212464, %v721
      %v731 = vor.u32 %v729, %v730
      %v732 = vshll.u32 2102212464, %v720
      %v733 = vshrl.u32 920167782, %v721
      %v734 = vor.u32 %v732, %v733
      %v735 = vshll.u32 920167782, %v720
      %v736 = vshrl.u32 1326507024, %v721
      %v737 = vor.u32 %v735, %v736
      %vm738 = vcmp.lt.s32.totalorder %v719, 1
      %vm739 = vcmp.lt.s32.totalorder %v719, 2
      %vm740 = vcmp.lt.s32.totalorder %v719, 3
      %vm741 = vcmp.lt.s32.totalorder %v719, 4
      %v742 = vsel %vm738, %v722, %v725
      %v743 = vsel %vm741, %v731, 2102212464
      %v744 = vsel %vm740, %v728, %v743
      %v745 = vsel %vm739, %v742, %v744
      %v746 = vsel %vm738, %v725, %v728
      %v747 = vsel %vm741, %v734, 920167782
      %v748 = vsel %vm740, %v731, %v747
      %v749 = vsel %vm739, %v746, %v748
      %v750 = vsel %vm738, %v728, %v731
      %v751 = vsel %vm741, %v737, 1326507024
      %v752 = vsel %vm740, %v734, %v751
      %v753 = vsel %vm739, %v750, %v752
      %v754 = vshll.u32 %v714, 8
      %v755 = vmul.u32.u64.compose %v754, %v753
      %v756 = vextract.low.u32 %v755
      %v757 = vextract.high.u32 %v755
      %v758 = vmul.u32.u64.compose %v754, %v749
      %v759 = vextract.low.u32 %v758
      %v760 = vextract.high.u32 %v758
      %v761 = vmul.u32 %v754, %v745
      %v762 = vadd.s32 %v757, %v759
      %vm763 = vc.u32 %v757, %v759
      %v764 = vadd.s32 %v760, 1
      %v765 = vsel %vm763, %v764, %v760
      %v766 = vadd.s32 %v761, %v765
      %v767 = vadd.s32 %v766, 536870912
      %v768 = vshrl.u32 %v767, 30
      %v769 = vshll.u32 %v768, 30
      %v770 = vsub.s32 %v766, %v769
      %vm771 = vcmp.lt.s32.totalorder %v770, 0
      %v772 = vsub.s32 0, %v770
      %v773 = vsel %vm771, %v772, %v770
      %v774 = vclz %v773
      %v775 = vsub.s32 %v774, 2
      %vm776 = vcmp.gt.s32.totalorder 0, %v775
      %v777 = vsel %vm776, 0, %v775
      %v778 = vsub.s32 32, %v777
      %v779 = vshll.u32 %v770, %v777
      %v780 = vshrl.u32 %v762, %v778
      %v781 = vor.u32 %v779, %v780
      %v782 = vsub.s32 4294967266, %v777
      %v783 = vadd.s32 %v782, 127
      %v784 = vshll.u32 %v783, 23
      %v785 = vor.u32 4788187, %v784
      %v786 = vand.u32 2147483647, %v785
      %v788 = vcvt.s32.f32 %v781
      %v789 = vmul.f32 %v788, %v786
      %v790 = vxor.u32 %v789, 2147483648
      %v791 = vsel %vm708, %v790, %v789
      %v792 = vsub.s32 4, %v768
      %v793 = vsel %vm708, %v792, %v768
      %v794 = vsel %vm707, %v179, %v791
      %v795 = vsel %vm707, 0, %v793
      %v796 = vcosq.f32.pop %v794
      %v797 = vsinq.f32.pop %v794
      %vm798 = vweird.f32 %v179
      %v799 = vand.u32 %v795, 3
      %vm800 = vcmp.lt.s32.totalorder %v799, 2
      %vm801 = vcmp.eq.s32.totalorder %v799, 0
      %v802 = vxor.u32 %v797, 2147483648
      %v803 = vsel %vm801, %v796, %v802
      %vm804 = vcmp.eq.s32.totalorder %v799, 2
      %v805 = vxor.u32 %v796, 2147483648
      %v806 = vsel %vm804, %v805, %v797
      %v807 = vsel %vm800, %v803, %v806
      %v808 = vsel %vm798, nan, %v807
      %v809 = vand.u32 2147483647, %v180
      %vm810 = vcmp.le.f32.partialorder %v809, 0.7853982
      %vm811 = vcmp.lt.s32.totalorder %v180, 0
      %v812 = vand.u32 %v180, 2139095040
      %v813 = vshrl.u32 %v812, 23
      %v814 = vsub.s32 %v813, 127
      %v815 = vand.u32 2147483647, %v180
      %v816 = vand.u32 %v815, 8388607
      %v817 = vor.u32 %v816, 8388608
      %v818 = vsub.s32 0, %v817
      %v819 = vadd.s32 %v814, 1
      %vm820 = vcmp.gt.s32.totalorder %v819, 0
      %v821 = vsel %vm820, %v819, 0
      %v822 = vshrl.u32 %v821, 5
      %v823 = vand.u32 %v821, 31
      %v824 = vsub.s32 32, %v823
      %v825 = vshrl.u32 683565275, %v824
      %v826 = vshll.u32 683565275, %v823
      %v827 = vshrl.u32 2475754826, %v824
      %v828 = vor.u32 %v826, %v827
      %v829 = vshll.u32 2475754826, %v823
      %v830 = vshrl.u32 2131351028, %v824
      %v831 = vor.u32 %v829, %v830
      %v832 = vshll.u32 2131351028, %v823
      %v833 = vshrl.u32 2102212464, %v824
      %v834 = vor.u32 %v832, %v833
      %v835 = vshll.u32 2102212464, %v823
      %v836 = vshrl.u32 920167782, %v824
      %v837 = vor.u32 %v835, %v836
      %v838 = vshll.u32 920167782, %v823
      %v839 = vshrl.u32 1326507024, %v824
      %v840 = vor.u32 %v838, %v839
      %vm841 = vcmp.lt.s32.totalorder %v822, 1
      %vm842 = vcmp.lt.s32.totalorder %v822, 2
      %vm843 = vcmp.lt.s32.totalorder %v822, 3
      %vm844 = vcmp.lt.s32.totalorder %v822, 4
      %v845 = vsel %vm841, %v825, %v828
      %v846 = vsel %vm844, %v834, 2102212464
      %v847 = vsel %vm843, %v831, %v846
      %v848 = vsel %vm842, %v845, %v847
      %v849 = vsel %vm841, %v828, %v831
      %v850 = vsel %vm844, %v837, 920167782
      %v851 = vsel %vm843, %v834, %v850
      %v852 = vsel %vm842, %v849, %v851
      %v853 = vsel %vm841, %v831, %v834
      %v854 = vsel %vm844, %v840, 1326507024
      %v855 = vsel %vm843, %v837, %v854
      %v856 = vsel %vm842, %v853, %v855
      %v857 = vshll.u32 %v817, 8
      %v858 = vmul.u32.u64.compose %v857, %v856
      %v859 = vextract.low.u32 %v858
      %v860 = vextract.high.u32 %v858
      %v861 = vmul.u32.u64.compose %v857, %v852
      %v862 = vextract.low.u32 %v861
      %v863 = vextract.high.u32 %v861
      %v864 = vmul.u32 %v857, %v848
      %v865 = vadd.s32 %v860, %v862
      %vm866 = vc.u32 %v860, %v862
      %v867 = vadd.s32 %v863, 1
      %v868 = vsel %vm866, %v867, %v863
      %v869 = vadd.s32 %v864, %v868
      %v870 = vadd.s32 %v869, 536870912
      %v871 = vshrl.u32 %v870, 30
      %v872 = vshll.u32 %v871, 30
      %v873 = vsub.s32 %v869, %v872
      %vm874 = vcmp.lt.s32.totalorder %v873, 0
      %v875 = vsub.s32 0, %v873
      %v876 = vsel %vm874, %v875, %v873
      %v877 = vclz %v876
      %v878 = vsub.s32 %v877, 2
      %vm879 = vcmp.gt.s32.totalorder 0, %v878
      %v880 = vsel %vm879, 0, %v878
      %v881 = vsub.s32 32, %v880
      %v882 = vshll.u32 %v873, %v880
      %v883 = vshrl.u32 %v865, %v881
      %v884 = vor.u32 %v882, %v883
      %v885 = vsub.s32 4294967266, %v880
      %v886 = vadd.s32 %v885, 127
      %v887 = vshll.u32 %v886, 23
      %v888 = vor.u32 4788187, %v887
      %v889 = vand.u32 2147483647, %v888
      %v891 = vcvt.s32.f32 %v884
      %v892 = vmul.f32 %v891, %v889
      %v893 = vxor.u32 %v892, 2147483648
      %v894 = vsel %vm811, %v893, %v892
      %v895 = vsub.s32 4, %v871
      %v896 = vsel %vm811, %v895, %v871
      %v897 = vsel %vm810, %v180, %v894
      %v898 = vsel %vm810, 0, %v896
      %v899 = vcosq.f32.pop %v897
      %v900 = vsinq.f32.pop %v897
      %vm901 = vweird.f32 %v180
      %v902 = vand.u32 %v898, 3
      %vm903 = vcmp.lt.s32.totalorder %v902, 2
      %vm904 = vcmp.eq.s32.totalorder %v902, 0
      %v905 = vxor.u32 %v900, 2147483648
      %v906 = vsel %vm904, %v899, %v905
      %vm907 = vcmp.eq.s32.totalorder %v902, 2
      %v908 = vxor.u32 %v899, 2147483648
      %v909 = vsel %vm907, %v908, %v900
      %v910 = vsel %vm903, %v906, %v909
      %v911 = vsel %vm901, nan, %v910
      %v912 = vand.u32 2147483647, %v181
      %vm913 = vcmp.le.f32.partialorder %v912, 0.7853982
      %vm914 = vcmp.lt.s32.totalorder %v181, 0
      %v915 = vand.u32 %v181, 2139095040
      %v916 = vshrl.u32 %v915, 23
      %v917 = vsub.s32 %v916, 127
      %v918 = vand.u32 2147483647, %v181
      %v919 = vand.u32 %v918, 8388607
      %v920 = vor.u32 %v919, 8388608
      %v921 = vsub.s32 0, %v920
      %v922 = vadd.s32 %v917, 1
      %vm923 = vcmp.gt.s32.totalorder %v922, 0
      %v924 = vsel %vm923, %v922, 0
      %v925 = vshrl.u32 %v924, 5
      %v926 = vand.u32 %v924, 31
      %v927 = vsub.s32 32, %v926
      %v928 = vshrl.u32 683565275, %v927
      %v929 = vshll.u32 683565275, %v926
      %v930 = vshrl.u32 2475754826, %v927
      %v931 = vor.u32 %v929, %v930
      %v932 = vshll.u32 2475754826, %v926
      %v933 = vshrl.u32 2131351028, %v927
      %v934 = vor.u32 %v932, %v933
      %v935 = vshll.u32 2131351028, %v926
      %v936 = vshrl.u32 2102212464, %v927
      %v937 = vor.u32 %v935, %v936
      %v938 = vshll.u32 2102212464, %v926
      %v939 = vshrl.u32 920167782, %v927
      %v940 = vor.u32 %v938, %v939
      %v941 = vshll.u32 920167782, %v926
      %v942 = vshrl.u32 1326507024, %v927
      %v943 = vor.u32 %v941, %v942
      %vm944 = vcmp.lt.s32.totalorder %v925, 1
      %vm945 = vcmp.lt.s32.totalorder %v925, 2
      %vm946 = vcmp.lt.s32.totalorder %v925, 3
      %vm947 = vcmp.lt.s32.totalorder %v925, 4
      %v948 = vsel %vm944, %v928, %v931
      %v949 = vsel %vm947, %v937, 2102212464
      %v950 = vsel %vm946, %v934, %v949
      %v951 = vsel %vm945, %v948, %v950
      %v952 = vsel %vm944, %v931, %v934
      %v953 = vsel %vm947, %v940, 920167782
      %v954 = vsel %vm946, %v937, %v953
      %v955 = vsel %vm945, %v952, %v954
      %v956 = vsel %vm944, %v934, %v937
      %v957 = vsel %vm947, %v943, 1326507024
      %v958 = vsel %vm946, %v940, %v957
      %v959 = vsel %vm945, %v956, %v958
      %v960 = vshll.u32 %v920, 8
      %v961 = vmul.u32.u64.compose %v960, %v959
      %v962 = vextract.low.u32 %v961
      %v963 = vextract.high.u32 %v961
      %v964 = vmul.u32.u64.compose %v960, %v955
      %v965 = vextract.low.u32 %v964
      %v966 = vextract.high.u32 %v964
      %v967 = vmul.u32 %v960, %v951
      %v968 = vadd.s32 %v963, %v965
      %vm969 = vc.u32 %v963, %v965
      %v970 = vadd.s32 %v966, 1
      %v971 = vsel %vm969, %v970, %v966
      %v972 = vadd.s32 %v967, %v971
      %v973 = vadd.s32 %v972, 536870912
      %v974 = vshrl.u32 %v973, 30
      %v975 = vshll.u32 %v974, 30
      %v976 = vsub.s32 %v972, %v975
      %vm977 = vcmp.lt.s32.totalorder %v976, 0
      %v978 = vsub.s32 0, %v976
      %v979 = vsel %vm977, %v978, %v976
      %v980 = vclz %v979
      %v981 = vsub.s32 %v980, 2
      %vm982 = vcmp.gt.s32.totalorder 0, %v981
      %v983 = vsel %vm982, 0, %v981
      %v984 = vsub.s32 32, %v983
      %v985 = vshll.u32 %v976, %v983
      %v986 = vshrl.u32 %v968, %v984
      %v987 = vor.u32 %v985, %v986
      %v988 = vsub.s32 4294967266, %v983
      %v989 = vadd.s32 %v988, 127
      %v990 = vshll.u32 %v989, 23
      %v991 = vor.u32 4788187, %v990
      %v992 = vand.u32 2147483647, %v991
      %v994 = vcvt.s32.f32 %v987
      %v995 = vmul.f32 %v994, %v992
      %v996 = vxor.u32 %v995, 2147483648
      %v997 = vsel %vm914, %v996, %v995
      %v998 = vsub.s32 4, %v974
      %v999 = vsel %vm914, %v998, %v974
      %v1000 = vsel %vm913, %v181, %v997
      %v1001 = vsel %vm913, 0, %v999
      %v1002 = vcosq.f32.pop %v1000
      %v1003 = vsinq.f32.pop %v1000
      %vm1004 = vweird.f32 %v181
      %v1005 = vand.u32 %v1001, 3
      %vm1006 = vcmp.lt.s32.totalorder %v1005, 2
      %vm1007 = vcmp.eq.s32.totalorder %v1005, 0
      %v1008 = vxor.u32 %v1003, 2147483648
      %v1009 = vsel %vm1007, %v1002, %v1008
      %vm1010 = vcmp.eq.s32.totalorder %v1005, 2
      %v1011 = vxor.u32 %v1002, 2147483648
      %v1012 = vsel %vm1010, %v1011, %v1003
      %v1013 = vsel %vm1006, %v1009, %v1012
      %v1014 = vsel %vm1004, nan, %v1013
      %1019 = vrot.lane.b32.xlu0 %v705, 16
      %v1020 = vpop.permute.xlu0 %1019
      %1021 = vrot.lane.b32.xlu0 %v808, 16
      %v1022 = vpop.permute.xlu0 %1021
      %1023 = vrot.lane.b32.xlu0 %v911, 16
      %v1024 = vpop.permute.xlu0 %1023
      %1025 = vrot.lane.b32.xlu0 %v1014, 16
      %v1026 = vpop.permute.xlu0 %1025
      %vm1031 = vcmask 261248
      %1032 = vst.msk [vmem:[%s145] sm:$0xff] %vm1031, %v1020
      %1033 = vst.msk [vmem:[%s145 + $0x8] sm:$0xff] %vm1031, %v1022
      %1034 = vst.msk [vmem:[%s145 + $0x10] sm:$0xff] %vm1031, %v1024
      %1035 = vst.msk [vmem:[%s145 + $0x18] sm:$0xff] %vm1031, %v1026
      %s1036 = smul.u32 4, %s13
      %p1037 = scmp.lt.s32.totalorder %s1036, 7
      %s1038 = scalar_select %p1037, %s1036, 7
      %s1039 = smul.addr %s1038, 8
      %s1040 = scalar_lea.vmem %s2, %s1039
      // Predicated region
      $region29: #{tpu_custom_call.1} parent=27 // pred_check
        %p1041 = pneg %p78
      $region30: #{tpu_custom_call.1} parent=27 // pred_check_branch
        %1043 = sbr.rel (%p1041) target = $region32
      $region31: #{tpu_custom_call.1} parent=27 // pred_region
        %s1044 = smul.u32 4, %s13
      $region32: #{tpu_custom_call.1} parent=27 // pred_fallthru
        _
    $region28: #{tpu_custom_call.1} parent=5 // pred_fallthru
      _
    %p1045 = scmp.le.s32.totalorder 2, %s8
    // Predicated region
    $region33: #{tpu_custom_call.1} parent=5 // pred_check
      %p1046 = pneg %p1045
    $region34: #{tpu_custom_call.1} parent=5 // pred_check_branch
      %1048 = sbr.rel (%p1046) target = $region36
    $region35: #{tpu_custom_call.1} parent=5 // pred_region
      %s1049 = ssub.s32 %s8, 2
      // Predicated region
      $region37: #{tpu_custom_call.1} parent=35 // pred_check
        %p1050 = pneg %p84
      $region38: #{tpu_custom_call.1} parent=35 // pred_check_branch
        %1052 = sbr.rel (%p1050) target = $region40
      $region39: #{tpu_custom_call.1} parent=35 // pred_region
        %s1053 = smul.u32 4, %s14
        %p1054 = scmp.lt.s32.totalorder %s1053, 7
        %s1055 = scalar_select %p1054, %s1053, 7
        %s1056 = smul.addr %s1055, 8
        %s1057 = scalar_lea.vmem %s2, %s1056
      $region40: #{tpu_custom_call.1} parent=35 // pred_fallthru
        _
    $region36: #{tpu_custom_call.1} parent=5 // pred_fallthru
      _
  $region6: #{tpu_custom_call.1} parent=0 // loop_footer
    %s12 = sadd.s32 1, %s8
  $region7: #{tpu_custom_call.1} parent=0 // loop_footer_branch
    %7 = sbr.rel target = $region3
  $region8: #{tpu_custom_call.1} parent=0 // loop_exit
    _

</llo_original>
